<compile_context>
chip_gen: v5e
topology: v5e:2x2
jax: 0.10.0
libtpu: 0.0.40
codegen_flags: <defaults>
</compile_context>

<pallas_src>
import jax
import jax.numpy as jnp
from jax.experimental import pallas as pl
from jax.experimental.pallas import tpu as pltpu


def make_policy_kernel(hidden_dtype=jnp.float32):
    def policy_kernel(xT_ref, w1T_ref, b1_ref, w2T_ref, b2_ref, whT_ref,
                      bh_ref, out_ref):
        # xT: (obs, tile) f32, batch on lanes.
        xT = xT_ref[...].astype(hidden_dtype)

        # shared_net: Linear -> Tanh -> Linear -> Tanh (transposed orientation).
        h1 = jnp.tanh(
            (jnp.dot(w1T_ref[...].astype(hidden_dtype), xT,
                     preferred_element_type=jnp.float32)
             + b1_ref[...]).astype(hidden_dtype))
        h2 = jnp.tanh(
            (jnp.dot(w2T_ref[...].astype(hidden_dtype), h1,
                     preferred_element_type=jnp.float32)
             + b2_ref[...]).astype(hidden_dtype))

        # Fused heads (f32): rows [0, act) = mean pre-act, [act, 2*act) = std.
        s = jnp.dot(whT_ref[...].astype(hidden_dtype), h2,
                    preferred_element_type=jnp.float32) + bh_ref[...]

        # Overflow-safe softplus: max(s, 0) + log(1 + exp(-|s|)).
        sp = jnp.maximum(s, 0.0) + jnp.log(1.0 + jnp.exp(-jnp.abs(s)))

        act = out_ref.shape[0] // 2
        row = jax.lax.broadcasted_iota(jnp.int32, s.shape, 0)
        # Mean rows pass through, std rows get softplus; branchless, lane-dense.
        out_ref[...] = jnp.where(row < act, s, sp)

    return policy_kernel


def _round_up(x, m):
    return (x + m - 1) // m * m


_MAX_TILE = 32768                 # ~10-15 MiB of live intermediates: safe on v7x
_VMEM_LIMIT = 48 * 1024 * 1024    # above v5e's 16 MiB default, below v7x's 64 MiB


def _choose_tile(batch, batch_tile):
    """Sanitized (multiple-of-128) batch tile, capped for VMEM, and sized so
    medium batches still get >= 2 grid steps (v7x two-TensorCore split)."""
    cap = min(_MAX_TILE, max(128, _round_up(int(batch_tile), 128)))
    if batch <= 128:
        return 128
    half = _round_up(pl.cdiv(batch, 2), 128)
    return max(128, min(cap, half))


def policy_network_forward(x, params, *, batch_tile=8192,
                           hidden_dtype=jnp.float32):
    """x: (batch, obs_dims).  Returns (action_means, action_stddevs),
    each (batch, action_dims) float32 (matches PolicyNetwork.forward)."""
    if x.dtype != jnp.float32:          # mirrors x.float(); no-op when already f32
        x = x.astype(jnp.float32)

    batch, obs = x.shape
    h1 = params["w1"].shape[1]
    h2 = params["w2"].shape[1]
    act = params["wm"].shape[1]

    # Pre-transpose weights so the kernel computes W^T @ x^T; fuse the heads.
    w1T = params["w1"].T                                            # (h1, obs)
    b1 = params["b1"].T                                             # (h1, 1)
    w2T = params["w2"].T                                            # (h2, h1)
    b2 = params["b2"].T                                             # (h2, 1)
    whT = jnp.concatenate([params["wm"], params["ws"]], axis=1).T   # (2*act, h2)
    bh = jnp.concatenate([params["bm"], params["bs"]], axis=1).T    # (2*act, 1)

    tile = _choose_tile(batch, batch_tile)
    grid = pl.cdiv(batch, tile)

    # Lane-dense orientation; ragged last block (batch % tile != 0) is handled
    # by Pallas OOB masking, so no explicit jnp.pad HBM pass is needed.
    xT = x.T                                                        # (obs, batch)

    kernel = make_policy_kernel(hidden_dtype)

    def pinned(shape):
        # Full-array block, same block index every grid step -> VMEM resident.
        return pl.BlockSpec(shape, lambda i: (0, 0))

    def run(dim_semantics):
        return pl.pallas_call(
            kernel,
            out_shape=jax.ShapeDtypeStruct((2 * act, batch), jnp.float32),
            grid=(grid,),
            in_specs=[
                pl.BlockSpec((obs, tile), lambda i: (0, i)),   # x^T batch tiles
                pinned((h1, obs)), pinned((h1, 1)),
                pinned((h2, h1)), pinned((h2, 1)),
                pinned((2 * act, h2)), pinned((2 * act, 1)),
            ],
            out_specs=pl.BlockSpec((2 * act, tile), lambda i: (0, i)),
            compiler_params=pltpu.CompilerParams(
                dimension_semantics=dim_semantics,
                vmem_limit_bytes=_VMEM_LIMIT),
        )(xT, w1T, b1, w2T, b2, whT, bh)

    # Prefer an explicit cross-TensorCore split of the batch grid (v7x); fall
    # back to plain "parallel" on single-TC chips / runtimes that reject it.
    semantics_options = []
    if grid >= 2 and hasattr(pltpu, "CORE_PARALLEL"):
        semantics_options.append((pltpu.CORE_PARALLEL,))
    semantics_options.append(("parallel",))

    out = None
    last_exc = None
    for sem in semantics_options:
        try:
            out = run(sem)
            break
        except Exception as exc:   # unsupported semantics on this chip -> retry
            last_exc = exc
    if out is None:
        raise last_exc

    means = out[:act].T
    stddevs = out[act:].T
    return means, stddevs


def init_params(key, obs_dims, action_dims):
    """Deterministic init mimicking nn.Linear's U(-1/sqrt(fan_in), 1/sqrt(fan_in)).
    Weights stored as (in_features, out_features), biases as (1, out_features)."""
    h1, h2 = 16, 32

    def linear(key, fan_in, fan_out):
        kw, kb = jax.random.split(key)
        bound = 1.0 / jnp.sqrt(jnp.float32(fan_in))
        w = jax.random.uniform(kw, (fan_in, fan_out), jnp.float32, -bound, bound)
        b = jax.random.uniform(kb, (1, fan_out), jnp.float32, -bound, bound)
        return w, b

    k1, k2, k3, k4 = jax.random.split(key, 4)
    w1, b1 = linear(k1, obs_dims, h1)
    w2, b2 = linear(k2, h1, h2)
    wm, bm = linear(k3, h2, action_dims)
    ws, bs = linear(k4, h2, action_dims)
    return {"w1": w1, "b1": b1, "w2": w2, "b2": b2,
            "wm": wm, "bm": bm, "ws": ws, "bs": bs}


def reference_forward(x, p):
    """Pure-JAX reference mirroring the PyTorch module."""
    x = x.astype(jnp.float32)
    h1 = jnp.tanh(x @ p["w1"] + p["b1"])
    h2 = jnp.tanh(h1 @ p["w2"] + p["b2"])
    mean = h2 @ p["wm"] + p["bm"]
    std = jnp.log(1.0 + jnp.exp(h2 @ p["ws"] + p["bs"]))
    return mean, std


if __name__ == "__main__":
    obs_dims, action_dims = 4, 2
    key = jax.random.PRNGKey(0)
    kx, kp, kx2 = jax.random.split(key, 3)
    params = init_params(kp, obs_dims, action_dims)

    # Small case: single grid step, ragged (masked) 128-lane tile.
    batch = 2
    x = jax.random.normal(kx, (batch, obs_dims), jnp.float32)
    means, stddevs = policy_network_forward(x, params)
    means = jax.block_until_ready(means)
    stddevs = jax.block_until_ready(stddevs)

    ref_means, ref_stddevs = reference_forward(x, params)
    assert means.shape == (batch, action_dims)
    assert stddevs.shape == (batch, action_dims)
    assert jnp.allclose(means, ref_means, atol=1e-5), "mean mismatch"
    assert jnp.allclose(stddevs, ref_stddevs, atol=1e-5), "stddev mismatch"
    assert bool(jnp.all(stddevs > 0)), "softplus output must be positive"

    # Larger, non-multiple batch: exercises multi-step grid, the ragged last
    # block without any explicit padding, and the CORE_PARALLEL->parallel path.
    batch2 = 300
    x2 = jax.random.normal(kx2, (batch2, obs_dims), jnp.float32)
    m2, s2 = policy_network_forward(x2, params, batch_tile=128)
    m2 = jax.block_until_ready(m2)
    s2 = jax.block_until_ready(s2)
    rm2, rs2 = reference_forward(x2, params)
    assert m2.shape == (batch2, action_dims)
    assert jnp.allclose(m2, rm2, atol=1e-5), "tiled mean mismatch"
    assert jnp.allclose(s2, rs2, atol=1e-5), "tiled stddev mismatch"

    print("KERNEL_OK")
</pallas_src>

<mosaic_0001>
module attributes {stable_mosaic.version = 11 : i64} {
  func.func @policy_kernel(%arg0: i32, %arg1: memref<4x128xf32, #tpu.memory_space<vmem>>, %arg2: memref<16x4xf32, #tpu.memory_space<vmem>>, %arg3: memref<16x1xf32, #tpu.memory_space<vmem>>, %arg4: memref<32x16xf32, #tpu.memory_space<vmem>>, %arg5: memref<32x1xf32, #tpu.memory_space<vmem>>, %arg6: memref<4x32xf32, #tpu.memory_space<vmem>>, %arg7: memref<4x1xf32, #tpu.memory_space<vmem>>, %arg8: memref<4x128xf32, #tpu.memory_space<vmem>>) attributes {dimension_semantics = [#tpu.dimension_semantics<parallel>], iteration_bounds = array<i64: 1>, scalar_prefetch = 0 : i64, scratch_operands = 0 : i64, tpu.core_type = #tpu.core_type<tc>, window_params = [{transform_indices = @transform_0, window_bounds = array<i64: 4, 128>}, {pipeline_mode = #tpu.pipeline_mode<synchronous>, transform_indices = @transform_1, window_bounds = array<i64: 16, 4>}, {pipeline_mode = #tpu.pipeline_mode<synchronous>, transform_indices = @transform_2, window_bounds = array<i64: 16, 1>}, {pipeline_mode = #tpu.pipeline_mode<synchronous>, transform_indices = @transform_3, window_bounds = array<i64: 32, 16>}, {pipeline_mode = #tpu.pipeline_mode<synchronous>, transform_indices = @transform_4, window_bounds = array<i64: 32, 1>}, {pipeline_mode = #tpu.pipeline_mode<synchronous>, transform_indices = @transform_5, window_bounds = array<i64: 4, 32>}, {pipeline_mode = #tpu.pipeline_mode<synchronous>, transform_indices = @transform_6, window_bounds = array<i64: 4, 1>}, {transform_indices = @transform_7, window_bounds = array<i64: 4, 128>}]} {
    %c0 = arith.constant 0 : index
    %c0_0 = arith.constant 0 : index
    %0 = vector.load %arg1[%c0, %c0_0] : memref<4x128xf32, #tpu.memory_space<vmem>>, vector<4x128xf32>
    %c0_1 = arith.constant 0 : index
    %c0_2 = arith.constant 0 : index
    %1 = vector.load %arg2[%c0_1, %c0_2] : memref<16x4xf32, #tpu.memory_space<vmem>>, vector<16x4xf32>
    %cst = arith.constant dense<0.000000e+00> : vector<16x128xf32>
    %2 = tpu.matmul %1, %0, %cst {dimension_numbers = #tpu.dot_dimension_numbers<[1], [0], [0], [1], [0, 0, 1, 1], [], []>} : vector<16x4xf32>, vector<4x128xf32>, vector<16x128xf32> -> vector<16x128xf32>
    %c0_3 = arith.constant 0 : index
    %c0_4 = arith.constant 0 : index
    %3 = vector.load %arg3[%c0_3, %c0_4] : memref<16x1xf32, #tpu.memory_space<vmem>>, vector<16x1xf32>
    %4 = vector.broadcast %3 : vector<16x1xf32> to vector<16x128xf32>
    %5 = arith.addf %2, %4 : vector<16x128xf32>
    %6 = math.tanh %5 : vector<16x128xf32>
    %c0_5 = arith.constant 0 : index
    %c0_6 = arith.constant 0 : index
    %7 = vector.load %arg4[%c0_5, %c0_6] : memref<32x16xf32, #tpu.memory_space<vmem>>, vector<32x16xf32>
    %cst_7 = arith.constant dense<0.000000e+00> : vector<32x128xf32>
    %8 = tpu.matmul %7, %6, %cst_7 {dimension_numbers = #tpu.dot_dimension_numbers<[1], [0], [0], [1], [0, 0, 1, 1], [], []>} : vector<32x16xf32>, vector<16x128xf32>, vector<32x128xf32> -> vector<32x128xf32>
    %c0_8 = arith.constant 0 : index
    %c0_9 = arith.constant 0 : index
    %9 = vector.load %arg5[%c0_8, %c0_9] : memref<32x1xf32, #tpu.memory_space<vmem>>, vector<32x1xf32>
    %10 = vector.broadcast %9 : vector<32x1xf32> to vector<32x128xf32>
    %11 = arith.addf %8, %10 : vector<32x128xf32>
    %12 = math.tanh %11 : vector<32x128xf32>
    %c0_10 = arith.constant 0 : index
    %c0_11 = arith.constant 0 : index
    %13 = vector.load %arg6[%c0_10, %c0_11] : memref<4x32xf32, #tpu.memory_space<vmem>>, vector<4x32xf32>
    %cst_12 = arith.constant dense<0.000000e+00> : vector<4x128xf32>
    %14 = tpu.matmul %13, %12, %cst_12 {dimension_numbers = #tpu.dot_dimension_numbers<[1], [0], [0], [1], [0, 0, 1, 1], [], []>} : vector<4x32xf32>, vector<32x128xf32>, vector<4x128xf32> -> vector<4x128xf32>
    %c0_13 = arith.constant 0 : index
    %c0_14 = arith.constant 0 : index
    %15 = vector.load %arg7[%c0_13, %c0_14] : memref<4x1xf32, #tpu.memory_space<vmem>>, vector<4x1xf32>
    %16 = vector.broadcast %15 : vector<4x1xf32> to vector<4x128xf32>
    %17 = arith.addf %14, %16 : vector<4x128xf32>
    %cst_15 = arith.constant 0.000000e+00 : f32
    %18 = vector.broadcast %cst_15 : f32 to vector<4x128xf32>
    %19 = arith.maximumf %17, %18 : vector<4x128xf32>
    %20 = math.absf %17 : vector<4x128xf32>
    %cst_16 = arith.constant 0.000000e+00 : f32
    %21 = vector.broadcast %cst_16 : f32 to vector<4x128xf32>
    %22 = arith.subf %21, %20 : vector<4x128xf32>
    %23 = math.exp %22 : vector<4x128xf32>
    %cst_17 = arith.constant 1.000000e+00 : f32
    %24 = vector.broadcast %cst_17 : f32 to vector<4x128xf32>
    %25 = arith.addf %24, %23 : vector<4x128xf32>
    %26 = math.log %25 : vector<4x128xf32>
    %27 = arith.addf %19, %26 : vector<4x128xf32>
    %28 = tpu.iota {dimensions = array<i32: 0>} : vector<4x128xi32>
    %c2_i32 = arith.constant 2 : i32
    %29 = vector.broadcast %c2_i32 : i32 to vector<4x128xi32>
    %30 = arith.cmpi slt, %28, %29 : vector<4x128xi32>
    %31 = arith.select %30, %17, %27 : vector<4x128xi1>, vector<4x128xf32>
    %c0_18 = arith.constant 0 : index
    %c0_19 = arith.constant 0 : index
    %32 = vector.load %arg8[%c0_18, %c0_19] : memref<4x128xf32, #tpu.memory_space<vmem>>, vector<4x128xf32>
    tpu.vector_store %arg8[%c0_18, %c0_19], %31 {strides = array<i32>} : memref<4x128xf32, #tpu.memory_space<vmem>>, vector<4x128xf32>,
    return
  }
  func.func @transform_0(%arg0: i32) -> (i32, i32) {
    %c0_i32 = arith.constant 0 : i32
    %c0_i32_0 = arith.constant 0 : i32
    return %c0_i32, %arg0 : i32, i32
  }
  func.func @transform_1(%arg0: i32) -> (i32, i32) {
    %c0_i32 = arith.constant 0 : i32
    %c0_i32_0 = arith.constant 0 : i32
    %c0_i32_1 = arith.constant 0 : i32
    return %c0_i32, %c0_i32_0 : i32, i32
  }
  func.func @transform_2(%arg0: i32) -> (i32, i32) {
    %c0_i32 = arith.constant 0 : i32
    %c0_i32_0 = arith.constant 0 : i32
    %c0_i32_1 = arith.constant 0 : i32
    return %c0_i32, %c0_i32_0 : i32, i32
  }
  func.func @transform_3(%arg0: i32) -> (i32, i32) {
    %c0_i32 = arith.constant 0 : i32
    %c0_i32_0 = arith.constant 0 : i32
    %c0_i32_1 = arith.constant 0 : i32
    return %c0_i32, %c0_i32_0 : i32, i32
  }
  func.func @transform_4(%arg0: i32) -> (i32, i32) {
    %c0_i32 = arith.constant 0 : i32
    %c0_i32_0 = arith.constant 0 : i32
    %c0_i32_1 = arith.constant 0 : i32
    return %c0_i32, %c0_i32_0 : i32, i32
  }
  func.func @transform_5(%arg0: i32) -> (i32, i32) {
    %c0_i32 = arith.constant 0 : i32
    %c0_i32_0 = arith.constant 0 : i32
    %c0_i32_1 = arith.constant 0 : i32
    return %c0_i32, %c0_i32_0 : i32, i32
  }
  func.func @transform_6(%arg0: i32) -> (i32, i32) {
    %c0_i32 = arith.constant 0 : i32
    %c0_i32_0 = arith.constant 0 : i32
    %c0_i32_1 = arith.constant 0 : i32
    return %c0_i32, %c0_i32_0 : i32, i32
  }
  func.func @transform_7(%arg0: i32) -> (i32, i32) {
    %c0_i32 = arith.constant 0 : i32
    %c0_i32_0 = arith.constant 0 : i32
    return %c0_i32, %arg0 : i32, i32
  }
}

</mosaic_0001>

<llo_original>
// kernel: tpu_custom_call.1
$region0: #{tpu_custom_call.1}
  #allocation0 [shape = 'u32[]', space=smem, size = 0x4, offset = 0x4, fixed_abs, tag = 'smem constant byte address 0x4 - core index']
  #allocation1 [shape = 'u32[72,128]{1,0:T(1,128)}', space=vmem, size = 0x9000, scoped, tag = 'internal scratch']
  %s0 = inlined_call_operand.vmem [shape: f32[4,2], index: 0, kind: input, shape index: {}]
  %s1 = inlined_call_operand.vmem [shape: f32[16,4], index: 1, kind: input, shape index: {}]
  %s2 = inlined_call_operand.vmem [shape: f32[16,1], index: 2, kind: input, shape index: {}]
  %s3 = inlined_call_operand.vmem [shape: f32[32,16], index: 3, kind: input, shape index: {}]
  %s4 = inlined_call_operand.vmem [shape: f32[32,1], index: 4, kind: input, shape index: {}]
  %s5 = inlined_call_operand.vmem [shape: f32[4,32], index: 5, kind: input, shape index: {}]
  %s6 = inlined_call_operand.vmem [shape: f32[4,1], index: 6, kind: input, shape index: {}]
  %s7 = inlined_call_operand.vmem [shape: f32[4,2], index: 7, kind: output, shape index: {}]
  %s8 = sld [smem:[#allocation0]]
  $region38: #{tpu_custom_call.1} parent=0
    _
  %s10 = ssub.s32 1, %s8
  %s11 = scalar_select 0, %s10, %s8
  // Predicated region
  $region2: #{tpu_custom_call.1} parent=0 // pred_check
    _
  $region3: #{tpu_custom_call.1} parent=0 // pred_check_branch
    %13 = sbr.rel (0) target = $region5
  $region4: #{tpu_custom_call.1} parent=0 // pred_region
    _
  $region5: #{tpu_custom_call.1} parent=0 // pred_fallthru
    _
  // Predicated region
  $region6: #{tpu_custom_call.1} parent=0 // pred_check
    _
  $region7: #{tpu_custom_call.1} parent=0 // pred_check_branch
    %15 = sbr.rel (0) target = $region9
  $region8: #{tpu_custom_call.1} parent=0 // pred_region
    _
  $region9: #{tpu_custom_call.1} parent=0 // pred_fallthru
    _
  // Predicated region
  $region10: #{tpu_custom_call.1} parent=0 // pred_check
    _
  $region11: #{tpu_custom_call.1} parent=0 // pred_check_branch
    %17 = sbr.rel (0) target = $region13
  $region12: #{tpu_custom_call.1} parent=0 // pred_region
    _
  $region13: #{tpu_custom_call.1} parent=0 // pred_fallthru
    _
  // Predicated region
  $region14: #{tpu_custom_call.1} parent=0 // pred_check
    _
  $region15: #{tpu_custom_call.1} parent=0 // pred_check_branch
    %19 = sbr.rel (0) target = $region17
  $region16: #{tpu_custom_call.1} parent=0 // pred_region
    _
  $region17: #{tpu_custom_call.1} parent=0 // pred_fallthru
    _
  // Predicated region
  $region18: #{tpu_custom_call.1} parent=0 // pred_check
    _
  $region19: #{tpu_custom_call.1} parent=0 // pred_check_branch
    %21 = sbr.rel (0) target = $region21
  $region20: #{tpu_custom_call.1} parent=0 // pred_region
    _
  $region21: #{tpu_custom_call.1} parent=0 // pred_fallthru
    _
  // Predicated region
  $region22: #{tpu_custom_call.1} parent=0 // pred_check
    _
  $region23: #{tpu_custom_call.1} parent=0 // pred_check_branch
    %23 = sbr.rel (0) target = $region25
  $region24: #{tpu_custom_call.1} parent=0 // pred_region
    _
  $region25: #{tpu_custom_call.1} parent=0 // pred_fallthru
    _
  // Predicated region
  $region26: #{tpu_custom_call.1} parent=0 // pred_check
    _
  $region27: #{tpu_custom_call.1} parent=0 // pred_check_branch
    %25 = sbr.rel (0) target = $region29
  $region28: #{tpu_custom_call.1} parent=0 // pred_region
    _
  $region29: #{tpu_custom_call.1} parent=0 // pred_fallthru
    _
  %v26 = vld [vmem:[%s0] sm:$0xf]
  %v27 = vld [vmem:[%s1] sm:$0xff]
  %v28 = vld [vmem:[%s1 + $0x8] sm:$0xff]
  %v29 = vld [vmem:[%s2] sm:$0xff]
  %v30 = vld [vmem:[%s2 + $0x8] sm:$0xff]
  %32 = vset.pattern.permute.xlu0 0
  %33 = vperm.xlu0 %32, %v29
  %v34 = vpop.permute.xlu0 %33
  %37 = vset.pattern.permute.xlu0 0
  %38 = vperm.xlu0 %37, %v30
  %v39 = vpop.permute.xlu0 %38
  %vm41 = vcmask 31744
  %v43 = vsel %vm41, %v27, 0
  %v46 = vsel %vm41, %v28, 0
  %vm48 = vcmask 1043456
  %v50 = vsel %vm48, %v26, 0
  %52 = vmatpush.msra.mxu0 0.0
  %53 = vmatpush.msra.mxu0 0.0
  %54 = vmatpush.msra.mxu0 0.0
  %55 = vmatpush.msra.mxu0 0.0
  %56 = vmatpush.msra.mxu0 0.0
  %57 = vmatpush.msra.mxu0 0.0
  %58 = vmatpush.msra.mxu0 0.0
  %59 = vmatpush.msra.mxu0 0.0
  %60 = vmatpush.msra.mxu0 0.0
  %61 = vmatpush.msra.mxu0 0.0
  %62 = vmatpush.msra.mxu0 0.0
  %63 = vmatpush.msra.mxu0 0.0
  %64 = vmatpush.msra.mxu0 0.0
  %65 = vmatpush.msra.mxu0 0.0
  %66 = vmatpush.msra.mxu0 0.0
  %67 = vmatpush.msra.mxu0 %v50
  %68 = vmatmul.f32.gmra.mxu0 %v43
  %v69 = vpop.f32.mrf.mxu0
  %v70 = vadd.f32 %v34, %v69
  %71 = vmatmul.f32.gmra.mxu0 %v46
  %v72 = vpop.f32.mrf.mxu0
  %v73 = vadd.f32 %v39, %v72
  %74 = vdwg.mxu0
  %v75 = vtanh.pop %v70
  %v76 = vtanh.pop %v73
  %v77 = vld [vmem:[%s3] sm:$0xff]
  %v78 = vld [vmem:[%s3 + $0x8] sm:$0xff]
  %v79 = vld [vmem:[%s3 + $0x10] sm:$0xff]
  %v80 = vld [vmem:[%s3 + $0x18] sm:$0xff]
  %v81 = vld [vmem:[%s4] sm:$0xff]
  %v82 = vld [vmem:[%s4 + $0x8] sm:$0xff]
  %v83 = vld [vmem:[%s4 + $0x10] sm:$0xff]
  %v84 = vld [vmem:[%s4 + $0x18] sm:$0xff]
  %86 = vset.pattern.permute.xlu0 0
  %87 = vperm.xlu0 %86, %v81
  %v88 = vpop.permute.xlu0 %87
  %91 = vset.pattern.permute.xlu0 0
  %92 = vperm.xlu0 %91, %v82
  %v93 = vpop.permute.xlu0 %92
  %96 = vset.pattern.permute.xlu0 0
  %97 = vperm.xlu0 %96, %v83
  %v98 = vpop.permute.xlu0 %97
  %101 = vset.pattern.permute.xlu0 0
  %102 = vperm.xlu0 %101, %v84
  %v103 = vpop.permute.xlu0 %102
  %vm105 = vcmask 130048
  %v107 = vsel %vm105, %v77, 0
  %v110 = vsel %vm105, %v78, 0
  %v113 = vsel %vm105, %v79, 0
  %v116 = vsel %vm105, %v80, 0
  %118 = vmatpush.msra.mxu0 0.0
  %119 = vmatpush.msra.mxu0 0.0
  %120 = vmatpush.msra.mxu0 0.0
  %121 = vmatpush.msra.mxu0 0.0
  %122 = vmatpush.msra.mxu0 0.0
  %123 = vmatpush.msra.mxu0 0.0
  %124 = vmatpush.msra.mxu0 0.0
  %125 = vmatpush.msra.mxu0 0.0
  %126 = vmatpush.msra.mxu0 0.0
  %127 = vmatpush.msra.mxu0 0.0
  %128 = vmatpush.msra.mxu0 0.0
  %129 = vmatpush.msra.mxu0 0.0
  %130 = vmatpush.msra.mxu0 0.0
  %131 = vmatpush.msra.mxu0 0.0
  %132 = vmatpush.msra.mxu0 %v76
  %133 = vmatpush.msra.mxu0 %v75
  %134 = vmatmul.f32.gmra.mxu0 %v107
  %v135 = vpop.f32.mrf.mxu0
  %v136 = vadd.f32 %v88, %v135
  %137 = vmatmul.f32.gmra.mxu0 %v110
  %v138 = vpop.f32.mrf.mxu0
  %v139 = vadd.f32 %v93, %v138
  %140 = vmatmul.f32.gmra.mxu0 %v113
  %v141 = vpop.f32.mrf.mxu0
  %v142 = vadd.f32 %v98, %v141
  %143 = vmatmul.f32.gmra.mxu0 %v116
  %v144 = vpop.f32.mrf.mxu0
  %v145 = vadd.f32 %v103, %v144
  %146 = vdwg.mxu0
  %v147 = vtanh.pop %v136
  %v148 = vtanh.pop %v139
  %v149 = vtanh.pop %v142
  %v150 = vtanh.pop %v145
  %v151 = vld [vmem:[%s5] sm:$0xf]
  %v152 = vld [vmem:[%s6] sm:$0xf]
  %154 = vset.pattern.permute.xlu0 0
  %155 = vperm.xlu0 %154, %v152
  %v156 = vpop.permute.xlu0 %155
  %vm158 = vcmask 261120
  %v160 = vsel %vm158, %v151, 0
  %162 = vmatpush.msra.mxu0 0.0
  %163 = vmatpush.msra.mxu0 0.0
  %164 = vmatpush.msra.mxu0 0.0
  %165 = vmatpush.msra.mxu0 0.0
  %166 = vmatpush.msra.mxu0 0.0
  %167 = vmatpush.msra.mxu0 0.0
  %168 = vmatpush.msra.mxu0 0.0
  %169 = vmatpush.msra.mxu0 0.0
  %170 = vmatpush.msra.mxu0 0.0
  %171 = vmatpush.msra.mxu0 0.0
  %172 = vmatpush.msra.mxu0 0.0
  %173 = vmatpush.msra.mxu0 0.0
  %174 = vmatpush.msra.mxu0 %v150
  %175 = vmatpush.msra.mxu0 %v149
  %176 = vmatpush.msra.mxu0 %v148
  %177 = vmatpush.msra.mxu0 %v147
  %178 = vmatmul.f32.gmra.mxu0 %v160
  %v179 = vpop.f32.mrf.mxu0
  %v180 = vadd.f32 %v156, %v179
  %181 = vdwg.mxu0
  %v182 = vmax.f32 %v180, 0.0
  %v183 = vand.u32 2147483647, %v180
  %v184 = vsub.f32 0.0, %v183
  %v185 = vmul.f32 %v184, 1.442695
  %v186 = vpow.pop %v185
  %v187 = vadd.f32 %v186, 1.0
  %v188 = vlog2.pop %v187
  %v189 = vmul.f32 %v188, 0.6931472
  %v190 = vadd.f32 %v182, %v189
  %v191 = vlaneseq
  %v192 = vshrl.u32 %v191, 7
  %vm193 = vcmp.lt.s32.totalorder %v192, 2
  %v194 = vsel %vm193, %v180, %v190
  %195 = vst [vmem:[%s7] sm:$0xf] %v194
  // Predicated region
  $region30: #{tpu_custom_call.1} parent=0 // pred_check
    _
  $region31: #{tpu_custom_call.1} parent=0 // pred_check_branch
    %197 = sbr.rel (0) target = $region33
  $region32: #{tpu_custom_call.1} parent=0 // pred_region
    _
  $region33: #{tpu_custom_call.1} parent=0 // pred_fallthru
    _
  // Predicated region
  $region34: #{tpu_custom_call.1} parent=0 // pred_check
    _
  $region35: #{tpu_custom_call.1} parent=0 // pred_check_branch
    %199 = sbr.rel (0) target = $region37
  $region36: #{tpu_custom_call.1} parent=0 // pred_region
    _
  $region37: #{tpu_custom_call.1} parent=0 // pred_fallthru
    _

</llo_original>
